<compile_context>
chip_gen: v7x
topology: tpu7x:2x2x1
jax: 0.10.0
libtpu: 0.0.40
codegen_flags: <defaults>
</compile_context>

<pallas_src>
import functools

import jax
import jax.numpy as jnp
from jax.experimental import pallas as pl
from jax.experimental.pallas import tpu as pltpu


def _combined_loss_kernel(x_ref, t_ref, s1_ref, s2_ref, f_ref, *, eps, gamma):
    """Grid = (N, J).  For each (n, j) tile, accumulate per-channel partial
    sums directly into the (C, 1) output blocks (resident across the J axis)."""
    j = pl.program_id(1)

    @pl.when(j == 0)
    def _():
        s1_ref[...] = jnp.zeros_like(s1_ref)
        s2_ref[...] = jnp.zeros_like(s2_ref)
        f_ref[...] = jnp.zeros_like(f_ref)

    x = x_ref[...].astype(jnp.float32)      # (C, TM)
    t = t_ref[...].astype(jnp.float32)      # (C, TM)  (bf16/int8 0/1 is exact)

    # ---- Dice partial sums (per channel) ----
    # Exact divide kept (approx reciprocal risked the 1e-4 rtol budget).
    dice_term = (2.0 * x * t) / (x + t + eps)
    s1_ref[...] += jnp.sum(dice_term, axis=1, keepdims=True)
    s2_ref[...] += jnp.sum((t == 1.0).astype(jnp.float32), axis=1, keepdims=True)

    # ---- Unweighted focal partial sums (per channel) ----
    # alpha[c] is a per-channel constant, so it factors out of the inner sum and
    # is applied in the wrapper -> no alpha DMA / broadcast inside the kernel.
    om = 1.0 - x
    pw = om * om if gamma == 2 else om ** gamma
    f_ref[...] += jnp.sum(-pw * t * jnp.log(x + eps), axis=1, keepdims=True)


def _pick_tiling(msp, max_tile):
    """Return (padded_msp, tile_m).  Prefer a tile that exactly divides msp so
    the NCDHW->(N,C,msp) reshape stays a zero-copy view (no padding pass)."""
    if msp % 128 == 0:
        q = msp // 128
        dmax = min(q, max(1, max_tile // 128))
        for d in range(dmax, 0, -1):
            if q % d == 0:
                tile = d * 128
                if tile * 8 >= min(msp, max_tile):  # big enough to amortize per-step cost
                    return msp, tile
                break
    # Fallback: zero-pad the flattened spatial axis (one extra copy, still
    # correct: zero padding contributes 0 to every partial sum).
    tile = max(128, (min(max_tile, 2048) // 128) * 128)
    return pl.cdiv(msp, tile) * tile, tile


def combined_loss(inputs, targets, alpha, *, eps=1e-4, l=1.0, gamma=2,
                  n_channels=10, max_tile_m=8192):
    """inputs, targets: (N, C, D, H, W); alpha: (C,).

    `targets` may be f32 / bf16 / int8 — one-hot 0/1 masks in a narrow dtype
    halve the kernel's target read bandwidth (the kernel casts to f32)."""
    N, C, D, H, W = inputs.shape
    msp = D * H * W
    msp_pad, tile_m = _pick_tiling(msp, max_tile_m)

    # Free, contiguous reshape — no transpose copy of the 5-D tensors.
    x3 = inputs.reshape(N, C, msp)
    t3 = targets.reshape(N, C, msp)
    if msp_pad != msp:
        pad = ((0, 0), (0, 0), (0, msp_pad - msp))
        x3 = jnp.pad(x3, pad)
        t3 = jnp.pad(t3, pad)

    grid = (N, msp_pad // tile_m)

    kernel = functools.partial(_combined_loss_kernel, eps=float(eps), gamma=gamma)

    part_shape = jax.ShapeDtypeStruct((N, C, 1), jnp.float32)
    part_spec = pl.BlockSpec((pl.Squeezed(), C, 1), lambda n, j: (n, 0, 0))
    in_spec_x = pl.BlockSpec((pl.Squeezed(), C, tile_m), lambda n, j: (n, 0, j))
    in_spec_t = pl.BlockSpec((pl.Squeezed(), C, tile_m), lambda n, j: (n, 0, j))

    s1, s2, fp = pl.pallas_call(
        kernel,
        out_shape=(part_shape, part_shape, part_shape),
        grid_spec=pltpu.PrefetchScalarGridSpec(
            num_scalar_prefetch=0,
            grid=grid,
            in_specs=[in_spec_x, in_spec_t],
            out_specs=(part_spec, part_spec, part_spec),
        ),
        compiler_params=pltpu.CompilerParams(
            # batch axis parallel (megacore on v7x), spatial-reduction axis last
            dimension_semantics=("parallel", "arbitrary")),
    )(x3, t3)

    # Tiny final combine on the (N, C) partials (tree-summed -> better accuracy
    # than a single running scalar accumulator).
    dice_num = jnp.sum(s1[..., 0], axis=0)          # (C,)
    organ = jnp.sum(s2[..., 0], axis=0)             # (C,)
    focal_pc = jnp.sum(fp[..., 0], axis=0)          # (C,) unweighted focal sums
    dice_loss = 1.0 - jnp.mean(dice_num / (organ + eps))
    total = float(N * C * D * H * W)                # original (unpadded) count
    focal = (jnp.sum(alpha.astype(jnp.float32) * focal_pc) / total) * float(n_channels)
    return focal + float(l) * dice_loss


def combined_loss_ref(inputs, targets, alpha, *, eps=1e-4, l=1.0, gamma=2,
                      n_channels=10):
    num = (2.0 * inputs * targets / (inputs + targets + eps)).sum(axis=(0, 2, 3, 4))
    organ = (targets == 1.0).sum(axis=(0, 2, 3, 4)).astype(jnp.float32)
    dsc = num / (organ + eps)
    dice_loss = 1.0 - dsc.mean()
    a = alpha[None, :, None, None, None]
    fl = -a * (1.0 - inputs) ** gamma * targets * jnp.log(inputs + eps)
    focal = fl.mean() * n_channels
    return focal + l * dice_loss


if __name__ == "__main__":
    # deterministic small example: 10 channels (matches the 10 focal weights)
    N, C, D, H, W = 2, 10, 8, 16, 16
    key = jax.random.PRNGKey(0)
    k1, k2 = jax.random.split(key)

    # per-channel focal weights from the module docstring
    alpha = jnp.array([0.5, 1.0, 4.0, 1.0, 4.0, 4.0, 1.0, 1.0, 3.0, 3.0],
                      dtype=jnp.float32)

    logits = jax.random.normal(k1, (N, C, D, H, W), dtype=jnp.float32)
    inputs = jax.nn.softmax(logits, axis=1)                          # probs in [0,1]
    labels = jax.random.randint(k2, (N, D, H, W), 0, C)
    # one-hot 0/1 masks are exact in bf16 -> halves target HBM read traffic
    targets = jnp.transpose(jax.nn.one_hot(labels, C, dtype=jnp.bfloat16),
                            (0, 4, 1, 2, 3))                         # (N,C,D,H,W)

    ref = combined_loss_ref(inputs, targets.astype(jnp.float32), alpha)

    # multi-step inner grid (J=4) exercises the cross-tile accumulation path
    loss_small_tile = jax.block_until_ready(
        combined_loss(inputs, targets, alpha, max_tile_m=512))
    # default large-tile path
    loss_default = jax.block_until_ready(combined_loss(inputs, targets, alpha))

    assert jnp.allclose(loss_small_tile, ref, rtol=1e-4, atol=1e-5), (loss_small_tile, ref)
    assert jnp.allclose(loss_default, ref, rtol=1e-4, atol=1e-5), (loss_default, ref)
    print("KERNEL_OK")
</pallas_src>

<mosaic_0001>
module attributes {stable_mosaic.version = 11 : i64} {
  func.func @_combined_loss_kernel(%arg0: i32, %arg1: i32, %arg2: memref<1x10x512xf32, #tpu.memory_space<vmem>>, %arg3: memref<1x10x512xbf16, #tpu.memory_space<vmem>>, %arg4: memref<1x10x1xf32, #tpu.memory_space<vmem>>, %arg5: memref<1x10x1xf32, #tpu.memory_space<vmem>>, %arg6: memref<1x10x1xf32, #tpu.memory_space<vmem>>) attributes {dimension_semantics = [#tpu.dimension_semantics<parallel>, #tpu.dimension_semantics<arbitrary>], iteration_bounds = array<i64: 2, 4>, scalar_prefetch = 0 : i64, scratch_operands = 0 : i64, tpu.core_type = #tpu.core_type<tc>, window_params = [{transform_indices = @transform_0, window_bounds = array<i64: 1, 10, 512>}, {transform_indices = @transform_1, window_bounds = array<i64: 1, 10, 512>}, {transform_indices = @transform_2, window_bounds = array<i64: 1, 10, 1>}, {transform_indices = @transform_3, window_bounds = array<i64: 1, 10, 1>}, {transform_indices = @transform_4, window_bounds = array<i64: 1, 10, 1>}]} {
    %c0_i32 = arith.constant 0 : i32
    %0 = arith.cmpi eq, %arg1, %c0_i32 : i32
    %1 = arith.extui %0 : i1 to i32
    %c0_i32_0 = arith.constant 0 : i32
    %2 = arith.cmpi ne, %1, %c0_i32_0 : i32
    scf.if %2 {
      %cst_32 = arith.constant 0.000000e+00 : f32
      %53 = vector.broadcast %cst_32 : f32 to vector<10x1xf32>
      %c0_33 = arith.constant 0 : index
      %c0_34 = arith.constant 0 : index
      %c0_35 = arith.constant 0 : index
      %54 = vector.load %arg4[%c0_33, %c0_34, %c0_35] : memref<1x10x1xf32, #tpu.memory_space<vmem>>, vector<1x10x1xf32>
      %55 = vector.shape_cast %54 : vector<1x10x1xf32> to vector<10x1xf32>
      %56 = vector.shape_cast %53 : vector<10x1xf32> to vector<1x10x1xf32>
      tpu.vector_store %arg4[%c0_33, %c0_34, %c0_35], %56 {strides = array<i32>} : memref<1x10x1xf32, #tpu.memory_space<vmem>>, vector<1x10x1xf32>,
      %cst_36 = arith.constant 0.000000e+00 : f32
      %57 = vector.broadcast %cst_36 : f32 to vector<10x1xf32>
      %c0_37 = arith.constant 0 : index
      %c0_38 = arith.constant 0 : index
      %c0_39 = arith.constant 0 : index
      %58 = vector.load %arg5[%c0_37, %c0_38, %c0_39] : memref<1x10x1xf32, #tpu.memory_space<vmem>>, vector<1x10x1xf32>
      %59 = vector.shape_cast %58 : vector<1x10x1xf32> to vector<10x1xf32>
      %60 = vector.shape_cast %57 : vector<10x1xf32> to vector<1x10x1xf32>
      tpu.vector_store %arg5[%c0_37, %c0_38, %c0_39], %60 {strides = array<i32>} : memref<1x10x1xf32, #tpu.memory_space<vmem>>, vector<1x10x1xf32>,
      %cst_40 = arith.constant 0.000000e+00 : f32
      %61 = vector.broadcast %cst_40 : f32 to vector<10x1xf32>
      %c0_41 = arith.constant 0 : index
      %c0_42 = arith.constant 0 : index
      %c0_43 = arith.constant 0 : index
      %62 = vector.load %arg6[%c0_41, %c0_42, %c0_43] : memref<1x10x1xf32, #tpu.memory_space<vmem>>, vector<1x10x1xf32>
      %63 = vector.shape_cast %62 : vector<1x10x1xf32> to vector<10x1xf32>
      %64 = vector.shape_cast %61 : vector<10x1xf32> to vector<1x10x1xf32>
      tpu.vector_store %arg6[%c0_41, %c0_42, %c0_43], %64 {strides = array<i32>} : memref<1x10x1xf32, #tpu.memory_space<vmem>>, vector<1x10x1xf32>,
    } else {
    }
    %c0 = arith.constant 0 : index
    %c0_1 = arith.constant 0 : index
    %c0_2 = arith.constant 0 : index
    %3 = vector.load %arg2[%c0, %c0_1, %c0_2] : memref<1x10x512xf32, #tpu.memory_space<vmem>>, vector<1x10x512xf32>
    %4 = vector.shape_cast %3 : vector<1x10x512xf32> to vector<10x512xf32>
    %c0_3 = arith.constant 0 : index
    %c0_4 = arith.constant 0 : index
    %c0_5 = arith.constant 0 : index
    %5 = vector.load %arg3[%c0_3, %c0_4, %c0_5] : memref<1x10x512xbf16, #tpu.memory_space<vmem>>, vector<1x10x512xbf16>
    %6 = vector.shape_cast %5 : vector<1x10x512xbf16> to vector<10x512xbf16>
    %7 = arith.extf %6 : vector<10x512xbf16> to vector<10x512xf32>
    %cst = arith.constant 2.000000e+00 : f32
    %8 = vector.broadcast %cst : f32 to vector<10x512xf32>
    %9 = arith.mulf %8, %4 : vector<10x512xf32>
    %10 = arith.mulf %9, %7 : vector<10x512xf32>
    %11 = arith.addf %4, %7 : vector<10x512xf32>
    %cst_6 = arith.constant 9.99999974E-5 : f32
    %12 = vector.broadcast %cst_6 : f32 to vector<10x512xf32>
    %13 = arith.addf %11, %12 : vector<10x512xf32>
    %14 = arith.divf %10, %13 : vector<10x512xf32>
    %c0_7 = arith.constant 0 : index
    %c0_8 = arith.constant 0 : index
    %c0_9 = arith.constant 0 : index
    %15 = vector.load %arg4[%c0_7, %c0_8, %c0_9] : memref<1x10x1xf32, #tpu.memory_space<vmem>>, vector<1x10x1xf32>
    %16 = vector.shape_cast %15 : vector<1x10x1xf32> to vector<10x1xf32>
    %cst_10 = arith.constant dense<0.000000e+00> : vector<10xf32>
    %17 = vector.multi_reduction <add>, %14, %cst_10 [1] : vector<10x512xf32> to vector<10xf32>
    %18 = vector.shape_cast %17 : vector<10xf32> to vector<10x1xf32>
    %19 = arith.addf %16, %18 : vector<10x1xf32>
    %c0_11 = arith.constant 0 : index
    %c0_12 = arith.constant 0 : index
    %c0_13 = arith.constant 0 : index
    %20 = vector.load %arg4[%c0_11, %c0_12, %c0_13] : memref<1x10x1xf32, #tpu.memory_space<vmem>>, vector<1x10x1xf32>
    %21 = vector.shape_cast %20 : vector<1x10x1xf32> to vector<10x1xf32>
    %22 = vector.shape_cast %19 : vector<10x1xf32> to vector<1x10x1xf32>
    tpu.vector_store %arg4[%c0_11, %c0_12, %c0_13], %22 {strides = array<i32>} : memref<1x10x1xf32, #tpu.memory_space<vmem>>, vector<1x10x1xf32>,
    %c0_14 = arith.constant 0 : index
    %c0_15 = arith.constant 0 : index
    %c0_16 = arith.constant 0 : index
    %23 = vector.load %arg5[%c0_14, %c0_15, %c0_16] : memref<1x10x1xf32, #tpu.memory_space<vmem>>, vector<1x10x1xf32>
    %24 = vector.shape_cast %23 : vector<1x10x1xf32> to vector<10x1xf32>
    %cst_17 = arith.constant 1.000000e+00 : f32
    %25 = vector.broadcast %cst_17 : f32 to vector<10x512xf32>
    %26 = arith.cmpf oeq, %7, %25 : vector<10x512xf32>
    %27 = arith.extui %26 : vector<10x512xi1> to vector<10x512xi32>
    %28 = arith.sitofp %27 : vector<10x512xi32> to vector<10x512xf32>
    %cst_18 = arith.constant dense<0.000000e+00> : vector<10xf32>
    %29 = vector.multi_reduction <add>, %28, %cst_18 [1] : vector<10x512xf32> to vector<10xf32>
    %30 = vector.shape_cast %29 : vector<10xf32> to vector<10x1xf32>
    %31 = arith.addf %24, %30 : vector<10x1xf32>
    %c0_19 = arith.constant 0 : index
    %c0_20 = arith.constant 0 : index
    %c0_21 = arith.constant 0 : index
    %32 = vector.load %arg5[%c0_19, %c0_20, %c0_21] : memref<1x10x1xf32, #tpu.memory_space<vmem>>, vector<1x10x1xf32>
    %33 = vector.shape_cast %32 : vector<1x10x1xf32> to vector<10x1xf32>
    %34 = vector.shape_cast %31 : vector<10x1xf32> to vector<1x10x1xf32>
    tpu.vector_store %arg5[%c0_19, %c0_20, %c0_21], %34 {strides = array<i32>} : memref<1x10x1xf32, #tpu.memory_space<vmem>>, vector<1x10x1xf32>,
    %cst_22 = arith.constant 1.000000e+00 : f32
    %35 = vector.broadcast %cst_22 : f32 to vector<10x512xf32>
    %36 = arith.subf %35, %4 : vector<10x512xf32>
    %37 = arith.mulf %36, %36 : vector<10x512xf32>
    %c0_23 = arith.constant 0 : index
    %c0_24 = arith.constant 0 : index
    %c0_25 = arith.constant 0 : index
    %38 = vector.load %arg6[%c0_23, %c0_24, %c0_25] : memref<1x10x1xf32, #tpu.memory_space<vmem>>, vector<1x10x1xf32>
    %39 = vector.shape_cast %38 : vector<1x10x1xf32> to vector<10x1xf32>
    %cst_26 = arith.constant 0.000000e+00 : f32
    %40 = vector.broadcast %cst_26 : f32 to vector<10x512xf32>
    %41 = arith.subf %40, %37 : vector<10x512xf32>
    %42 = arith.mulf %41, %7 : vector<10x512xf32>
    %cst_27 = arith.constant 9.99999974E-5 : f32
    %43 = vector.broadcast %cst_27 : f32 to vector<10x512xf32>
    %44 = arith.addf %4, %43 : vector<10x512xf32>
    %45 = math.log %44 : vector<10x512xf32>
    %46 = arith.mulf %42, %45 : vector<10x512xf32>
    %cst_28 = arith.constant dense<0.000000e+00> : vector<10xf32>
    %47 = vector.multi_reduction <add>, %46, %cst_28 [1] : vector<10x512xf32> to vector<10xf32>
    %48 = vector.shape_cast %47 : vector<10xf32> to vector<10x1xf32>
    %49 = arith.addf %39, %48 : vector<10x1xf32>
    %c0_29 = arith.constant 0 : index
    %c0_30 = arith.constant 0 : index
    %c0_31 = arith.constant 0 : index
    %50 = vector.load %arg6[%c0_29, %c0_30, %c0_31] : memref<1x10x1xf32, #tpu.memory_space<vmem>>, vector<1x10x1xf32>
    %51 = vector.shape_cast %50 : vector<1x10x1xf32> to vector<10x1xf32>
    %52 = vector.shape_cast %49 : vector<10x1xf32> to vector<1x10x1xf32>
    tpu.vector_store %arg6[%c0_29, %c0_30, %c0_31], %52 {strides = array<i32>} : memref<1x10x1xf32, #tpu.memory_space<vmem>>, vector<1x10x1xf32>,
    return
  }
  func.func @transform_0(%arg0: i32, %arg1: i32) -> (i32, i32, i32) {
    %c0_i32 = arith.constant 0 : i32
    %c0_i32_0 = arith.constant 0 : i32
    return %arg0, %c0_i32, %arg1 : i32, i32, i32
  }
  func.func @transform_1(%arg0: i32, %arg1: i32) -> (i32, i32, i32) {
    %c0_i32 = arith.constant 0 : i32
    %c0_i32_0 = arith.constant 0 : i32
    return %arg0, %c0_i32, %arg1 : i32, i32, i32
  }
  func.func @transform_2(%arg0: i32, %arg1: i32) -> (i32, i32, i32) {
    %c0_i32 = arith.constant 0 : i32
    %c0_i32_0 = arith.constant 0 : i32
    %c0_i32_1 = arith.constant 0 : i32
    return %arg0, %c0_i32, %c0_i32_0 : i32, i32, i32
  }
  func.func @transform_3(%arg0: i32, %arg1: i32) -> (i32, i32, i32) {
    %c0_i32 = arith.constant 0 : i32
    %c0_i32_0 = arith.constant 0 : i32
    %c0_i32_1 = arith.constant 0 : i32
    return %arg0, %c0_i32, %c0_i32_0 : i32, i32, i32
  }
  func.func @transform_4(%arg0: i32, %arg1: i32) -> (i32, i32, i32) {
    %c0_i32 = arith.constant 0 : i32
    %c0_i32_0 = arith.constant 0 : i32
    %c0_i32_1 = arith.constant 0 : i32
    return %arg0, %c0_i32, %c0_i32_0 : i32, i32, i32
  }
}

</mosaic_0001>

<llo_original>
// kernel: tpu_custom_call.1
$region0: #{tpu_custom_call.1}
  #allocation0 [shape = 'u32[]', space=smem, size = 0x4, offset = 0x4, fixed_abs, tag = 'smem constant byte address 0x4 - core index']
  #allocation1 [shape = 'u32[144,128]{1,0:T(1,128)}', space=vmem, size = 0x12000, scoped, tag = 'internal scratch']
  %s0 = inlined_call_operand.vmem [shape: f32[2,10,2048], index: 0, kind: input, shape index: {}]
  %s1 = inlined_call_operand.vmem [shape: bf16[2,10,2048], index: 1, kind: input, shape index: {}]
  %s2 = inlined_call_operand.vmem [shape: f32[2,10,1], index: 2, kind: output, shape index: {0}]
  %s3 = inlined_call_operand.vmem [shape: f32[2,10,1], index: 3, kind: output, shape index: {1}]
  %s4 = inlined_call_operand.vmem [shape: f32[2,10,1], index: 4, kind: output, shape index: {2}]
  %5 = xla_tuple %s2, %s3, %s4
  %s6 = sld [smem:[#allocation0]]
  $region107: #{tpu_custom_call.1} parent=0
    _
  %s8 = ssub.s32 1, %s6
  %s9 = scalar_select 0, %s8, %s6
  $region1: #{tpu_custom_call.1} parent=0
    #allocation2 [shape = 'u8[65536]{0}', space=vmem, size = 0x10000, scoped, tag = 'input window, operand 0']
    #allocation3 [shape = 'u8[32768]{0}', space=vmem, size = 0x8000, scoped, tag = 'input window, operand 1']
    loop: start=0, step=1, limit=10
    $region2: #{tpu_custom_call.1} parent=1 // loop_pre_header
      _
    $region3: #{tpu_custom_call.1} parent=1 // loop_header
      %s11 = sphi 0, %s15
      %p12 = scmp.ge.s32.totalorder %s11, 10
      %s18 = sphi 0, %s30
      %s19 = sphi 0, %s26
      %s20 = sphi 0, %s18
      %s21 = sphi 0, %s19
      %s22 = sphi 0, %s20
      %s23 = sphi 0, %s21
      %s35 = sphi 0, %s37
      %s38 = sphi 0, %s35
      %s39 = sphi 0, %s38
      %s55 = sphi 0, %s39
      %s63 = sphi 0, %s65
      %s66 = sphi 0, %s63
      %s67 = sphi 0, %s66
      %s83 = sphi 0, %s67
      %s89 = sphi 0, %s91
      %s92 = sphi 0, %s89
      %s93 = sphi 0, %s92
      %s109 = sphi 0, %s93
      %s115 = sphi 0, %s117
      %s118 = sphi 0, %s115
      %s119 = sphi 0, %s118
      %s135 = sphi 0, %s119
      %s141 = sphi 0, %s143
      %s144 = sphi 0, %s141
      %s145 = sphi 0, %s144
      %s161 = sphi 0, %s145
    $region4: #{tpu_custom_call.1} parent=1 // loop_header_branch
      %14 = sbr.rel (%p12) target = $region8
    $region5: #{tpu_custom_call.1} parent=1 // loop_body
      %s16 = ssub.s32 %s11, 1
      %s17 = ssub.s32 %s11, 2
      %s24 = sadd.s32 1, %s19
      %p25 = scmp.ge.s32.totalorder %s24, 4
      %s26 = scalar_select %p25, 0, %s24
      %s27 = sadd.s32 1, %s18
      %s28 = scalar_select %p25, %s27, %s18
      %p29 = scmp.ge.s32.totalorder %s28, 2
      %s30 = scalar_select %p29, 0, %s28
      %s31 = ssub.s32 %s18, %s30
      %s32 = ssub.s32 %s19, %s26
      %s33 = sor.u32 %s31, %s32
      %p34 = scmp.eq.s32.totalorder %s33, 0
      %s36 = sadd.s32 %s35, 1
      %s37 = scalar_select %p34, %s35, %s36
      %p40 = pneg %p34
      %p41 = scmp.eq.s32.totalorder %s11, 7
      %p42 = por %p40, %p41
      %p43 = scmp.ne.s32.totalorder %s35, %s38
      %p44 = scmp.eq.s32.totalorder %s11, 0
      %p45 = por %p43, %p44
      %p46 = scmp.ne.s32.totalorder %s35, %s38
      %p47 = scmp.eq.s32.totalorder %s16, 7
      %p48 = por %p46, %p47
      %p49 = scmp.ne.s32.totalorder %s38, %s39
      %p50 = scmp.eq.s32.totalorder %s16, 0
      %p51 = por %p49, %p50
      %p52 = scmp.ne.s32.totalorder %s38, %s39
      %p53 = scmp.eq.s32.totalorder %s17, 7
      %p54 = por %p52, %p53
      %p56 = scmp.ne.s32.totalorder %s39, %s55
      %p57 = scmp.eq.s32.totalorder %s17, 0
      %p58 = por %p56, %p57
      %s59 = ssub.s32 %s18, %s30
      %s60 = ssub.s32 %s19, %s26
      %s61 = sor.u32 %s59, %s60
      %p62 = scmp.eq.s32.totalorder %s61, 0
      %s64 = sadd.s32 %s63, 1
      %s65 = scalar_select %p62, %s63, %s64
      %p68 = pneg %p62
      %p69 = scmp.eq.s32.totalorder %s11, 7
      %p70 = por %p68, %p69
      %p71 = scmp.ne.s32.totalorder %s63, %s66
      %p72 = scmp.eq.s32.totalorder %s11, 0
      %p73 = por %p71, %p72
      %p74 = scmp.ne.s32.totalorder %s63, %s66
      %p75 = scmp.eq.s32.totalorder %s16, 7
      %p76 = por %p74, %p75
      %p77 = scmp.ne.s32.totalorder %s66, %s67
      %p78 = scmp.eq.s32.totalorder %s16, 0
      %p79 = por %p77, %p78
      %p80 = scmp.ne.s32.totalorder %s66, %s67
      %p81 = scmp.eq.s32.totalorder %s17, 7
      %p82 = por %p80, %p81
      %p84 = scmp.ne.s32.totalorder %s67, %s83
      %p85 = scmp.eq.s32.totalorder %s17, 0
      %p86 = por %p84, %p85
      %s87 = ssub.s32 %s18, %s30
      %p88 = scmp.eq.s32.totalorder %s87, 0
      %s90 = sadd.s32 %s89, 1
      %s91 = scalar_select %p88, %s89, %s90
      %p94 = pneg %p88
      %p95 = scmp.eq.s32.totalorder %s11, 7
      %p96 = por %p94, %p95
      %p97 = scmp.ne.s32.totalorder %s89, %s92
      %p98 = scmp.eq.s32.totalorder %s11, 0
      %p99 = por %p97, %p98
      %p100 = scmp.ne.s32.totalorder %s89, %s92
      %p101 = scmp.eq.s32.totalorder %s16, 7
      %p102 = por %p100, %p101
      %p103 = scmp.ne.s32.totalorder %s92, %s93
      %p104 = scmp.eq.s32.totalorder %s16, 0
      %p105 = por %p103, %p104
      %p106 = scmp.ne.s32.totalorder %s92, %s93
      %p107 = scmp.eq.s32.totalorder %s17, 7
      %p108 = por %p106, %p107
      %p110 = scmp.ne.s32.totalorder %s93, %s109
      %p111 = scmp.eq.s32.totalorder %s17, 0
      %p112 = por %p110, %p111
      %s113 = ssub.s32 %s18, %s30
      %p114 = scmp.eq.s32.totalorder %s113, 0
      %s116 = sadd.s32 %s115, 1
      %s117 = scalar_select %p114, %s115, %s116
      %p120 = pneg %p114
      %p121 = scmp.eq.s32.totalorder %s11, 7
      %p122 = por %p120, %p121
      %p123 = scmp.ne.s32.totalorder %s115, %s118
      %p124 = scmp.eq.s32.totalorder %s11, 0
      %p125 = por %p123, %p124
      %p126 = scmp.ne.s32.totalorder %s115, %s118
      %p127 = scmp.eq.s32.totalorder %s16, 7
      %p128 = por %p126, %p127
      %p129 = scmp.ne.s32.totalorder %s118, %s119
      %p130 = scmp.eq.s32.totalorder %s16, 0
      %p131 = por %p129, %p130
      %p132 = scmp.ne.s32.totalorder %s118, %s119
      %p133 = scmp.eq.s32.totalorder %s17, 7
      %p134 = por %p132, %p133
      %p136 = scmp.ne.s32.totalorder %s119, %s135
      %p137 = scmp.eq.s32.totalorder %s17, 0
      %p138 = por %p136, %p137
      %s139 = ssub.s32 %s18, %s30
      %p140 = scmp.eq.s32.totalorder %s139, 0
      %s142 = sadd.s32 %s141, 1
      %s143 = scalar_select %p140, %s141, %s142
      %p146 = pneg %p140
      %p147 = scmp.eq.s32.totalorder %s11, 7
      %p148 = por %p146, %p147
      %p149 = scmp.ne.s32.totalorder %s141, %s144
      %p150 = scmp.eq.s32.totalorder %s11, 0
      %p151 = por %p149, %p150
      %p152 = scmp.ne.s32.totalorder %s141, %s144
      %p153 = scmp.eq.s32.totalorder %s16, 7
      %p154 = por %p152, %p153
      %p155 = scmp.ne.s32.totalorder %s144, %s145
      %p156 = scmp.eq.s32.totalorder %s16, 0
      %p157 = por %p155, %p156
      %p158 = scmp.ne.s32.totalorder %s144, %s145
      %p159 = scmp.eq.s32.totalorder %s17, 7
      %p160 = por %p158, %p159
      %p162 = scmp.ne.s32.totalorder %s145, %s161
      %p163 = scmp.eq.s32.totalorder %s17, 0
      %p164 = por %p162, %p163
      %p165 = scmp.le.s32.totalorder 1, %s11
      %p166 = scmp.lt.s32.totalorder %s11, 9
      %p167 = pnand %p165, %p166
      %p168 = pneg %p167
      // Predicated region
      $region9: #{tpu_custom_call.1} parent=5 // pred_check
        _
      $region10: #{tpu_custom_call.1} parent=5 // pred_check_branch
        %170 = sbr.rel (%p167) target = $region12
      $region11: #{tpu_custom_call.1} parent=5 // pred_region
        %s171 = ssub.s32 %s11, 1
      $region12: #{tpu_custom_call.1} parent=5 // pred_fallthru
        _
      %p172 = scmp.lt.s32.totalorder %s11, 8
      // Predicated region
      $region13: #{tpu_custom_call.1} parent=5 // pred_check
        %p173 = pneg %p172
      $region14: #{tpu_custom_call.1} parent=5 // pred_check_branch
        %175 = sbr.rel (%p173) target = $region16
      $region15: #{tpu_custom_call.1} parent=5 // pred_region
        // Predicated region
        $region17: #{tpu_custom_call.1} parent=15 // pred_check
          %p176 = pneg %p45
        $region18: #{tpu_custom_call.1} parent=15 // pred_check_branch
          %178 = sbr.rel (%p176) target = $region20
        $region19: #{tpu_custom_call.1} parent=15 // pred_region
          %s179 = sand.u32 %s35, 1
          %s180 = sand.u32 %s35, 1
          %s181 = smul.addr %s180, 64
          %s182 = scalar_lea.vmem [#allocation2], %s181
          %s183 = smul.u32 4, %s19
          %s184 = smul.addr %s18, 32
          %s185 = sadd.s32 %s183, %s184
          %s186 = smul.addr %s185, 8
          %s187 = scalar_lea.vmem %s0, %s186
          // Predicated region
          $region21: #{tpu_custom_call.1} parent=19 // pred_check
            _
          $region22: #{tpu_custom_call.1} parent=19 // pred_check_branch
            %189 = sbr.rel (0) target = $region24
          $region23: #{tpu_custom_call.1} parent=19 // pred_region
            // Predicated region
            $region25: #{tpu_custom_call.1} parent=23 // pred_check
              _
            $region26: #{tpu_custom_call.1} parent=23 // pred_check_branch
              %191 = sbr.rel (0) target = $region28
            $region27: #{tpu_custom_call.1} parent=23 // pred_region
              loop: start=0, step=1, limit=1
              $region29: #{tpu_custom_call.1} parent=27 // loop_pre_header
                _
              $region30: #{tpu_custom_call.1} parent=27 // loop_header
                %s193 = sphi 0, %s197
                %p194 = scmp.ge.s32.totalorder %s193, 1
                %s198 = sphi %s187, %s187
                %s199 = sphi %s182, %s182
              $region31: #{tpu_custom_call.1} parent=27 // loop_header_branch
                %196 = sbr.rel (%p194) target = $region35
              $region32: #{tpu_custom_call.1} parent=27 // loop_body
                %v200 = vld [vmem:[%s198] sm:$0xff]
                %201 = vst [vmem:[%s199] sm:$0xff] %v200
                %v202 = vld [vmem:[%s198 + $0x8] sm:$0xff]
                %203 = vst [vmem:[%s199 + $0x8] sm:$0xff] %v202
                %v204 = vld [vmem:[%s198 + $0x10] sm:$0xff]
                %205 = vst [vmem:[%s199 + $0x10] sm:$0xff] %v204
                %v206 = vld [vmem:[%s198 + $0x18] sm:$0xff]
                %207 = vst [vmem:[%s199 + $0x18] sm:$0xff] %v206
                %v208 = vld [vmem:[%s198 + $0x80] sm:$0xff]
                %209 = vst [vmem:[%s199 + $0x20] sm:$0xff] %v208
                %v210 = vld [vmem:[%s198 + $0x88] sm:$0xff]
                %211 = vst [vmem:[%s199 + $0x28] sm:$0xff] %v210
                %v212 = vld [vmem:[%s198 + $0x90] sm:$0xff]
                %213 = vst [vmem:[%s199 + $0x30] sm:$0xff] %v212
                %v214 = vld [vmem:[%s198 + $0x98] sm:$0xff]
                %215 = vst [vmem:[%s199 + $0x38] sm:$0xff] %v214
              $region33: #{tpu_custom_call.1} parent=27 // loop_footer
                %s197 = sadd.s32 1, %s193
              $region34: #{tpu_custom_call.1} parent=27 // loop_footer_branch
                %192 = sbr.rel target = $region30
              $region35: #{tpu_custom_call.1} parent=27 // loop_exit
                _
            $region28: #{tpu_custom_call.1} parent=23 // pred_fallthru
              _
            // Predicated region
            $region36: #{tpu_custom_call.1} parent=23 // pred_check
              _
            $region37: #{tpu_custom_call.1} parent=23 // pred_check_branch
              %217 = sbr.rel target = $region39
            $region38: #{tpu_custom_call.1} parent=23 // pred_region
              _
            $region39: #{tpu_custom_call.1} parent=23 // pred_fallthru
              _
          $region24: #{tpu_custom_call.1} parent=19 // pred_fallthru
            _
          %218 = vnop
        $region20: #{tpu_custom_call.1} parent=15 // pred_fallthru
          _
        // Predicated region
        $region40: #{tpu_custom_call.1} parent=15 // pred_check
          %p219 = pneg %p73
        $region41: #{tpu_custom_call.1} parent=15 // pred_check_branch
          %221 = sbr.rel (%p219) target = $region43
        $region42: #{tpu_custom_call.1} parent=15 // pred_region
          %s222 = sand.u32 %s63, 1
          %s223 = sand.u32 %s63, 1
          %s224 = smul.addr %s223, 32
          %s225 = scalar_lea.vmem [#allocation3], %s224
          %s226 = smul.u32 4, %s19
          %s227 = smul.addr %s18, 32
          %s228 = sadd.s32 %s226, %s227
          %s229 = smul.addr %s228, 4
          %s230 = scalar_lea.vmem %s1, %s229
          // Predicated region
          $region44: #{tpu_custom_call.1} parent=42 // pred_check
            _
          $region45: #{tpu_custom_call.1} parent=42 // pred_check_branch
            %232 = sbr.rel (0) target = $region47
          $region46: #{tpu_custom_call.1} parent=42 // pred_region
            // Predicated region
            $region48: #{tpu_custom_call.1} parent=46 // pred_check
              _
            $region49: #{tpu_custom_call.1} parent=46 // pred_check_branch
              %234 = sbr.rel (0) target = $region51
            $region50: #{tpu_custom_call.1} parent=46 // pred_region
              loop: start=0, step=1, limit=1
              $region52: #{tpu_custom_call.1} parent=50 // loop_pre_header
                _
              $region53: #{tpu_custom_call.1} parent=50 // loop_header
                %s236 = sphi 0, %s240
                %p237 = scmp.ge.s32.totalorder %s236, 1
                %s241 = sphi %s230, %s230
                %s242 = sphi %s225, %s225
              $region54: #{tpu_custom_call.1} parent=50 // loop_header_branch
                %239 = sbr.rel (%p237) target = $region58
              $region55: #{tpu_custom_call.1} parent=50 // loop_body
                %v243 = vld [vmem:[%s241] sm:$0xff]
                %244 = vst [vmem:[%s242] sm:$0xff] %v243
                %v245 = vld [vmem:[%s241 + $0x8] sm:$0xff]
                %246 = vst [vmem:[%s242 + $0x8] sm:$0xff] %v245
                %v247 = vld [vmem:[%s241 + $0x40] sm:$0xff]
                %248 = vst [vmem:[%s242 + $0x10] sm:$0xff] %v247
                %v249 = vld [vmem:[%s241 + $0x48] sm:$0xff]
                %250 = vst [vmem:[%s242 + $0x18] sm:$0xff] %v249
              $region56: #{tpu_custom_call.1} parent=50 // loop_footer
                %s240 = sadd.s32 1, %s236
              $region57: #{tpu_custom_call.1} parent=50 // loop_footer_branch
                %235 = sbr.rel target = $region53
              $region58: #{tpu_custom_call.1} parent=50 // loop_exit
                _
            $region51: #{tpu_custom_call.1} parent=46 // pred_fallthru
              _
            // Predicated region
            $region59: #{tpu_custom_call.1} parent=46 // pred_check
              _
            $region60: #{tpu_custom_call.1} parent=46 // pred_check_branch
              %252 = sbr.rel target = $region62
            $region61: #{tpu_custom_call.1} parent=46 // pred_region
              _
            $region62: #{tpu_custom_call.1} parent=46 // pred_fallthru
              _
          $region47: #{tpu_custom_call.1} parent=42 // pred_fallthru
            _
          %253 = vnop
        $region43: #{tpu_custom_call.1} parent=15 // pred_fallthru
          _
      $region16: #{tpu_custom_call.1} parent=5 // pred_fallthru
        _
      %p254 = scmp.le.s32.totalorder 1, %s11
      %p255 = scmp.lt.s32.totalorder %s11, 9
      %p256 = pnand %p254, %p255
      %p257 = pneg %p256
      // Predicated region
      $region63: #{tpu_custom_call.1} parent=5 // pred_check
        _
      $region64: #{tpu_custom_call.1} parent=5 // pred_check_branch
        %259 = sbr.rel (%p256) target = $region66
      $region65: #{tpu_custom_call.1} parent=5 // pred_region
        %s260 = ssub.s32 %s11, 1
        %s261 = sand.u32 %s38, 1
        %s262 = sand.u32 %s38, 1
        %s263 = smul.addr %s262, 64
        %s264 = scalar_lea.vmem [#allocation2], %s263
        // Predicated region
        $region67: #{tpu_custom_call.1} parent=65 // pred_check
          %p265 = pneg %p51
        $region68: #{tpu_custom_call.1} parent=65 // pred_check_branch
          %267 = sbr.rel (%p265) target = $region70
        $region69: #{tpu_custom_call.1} parent=65 // pred_region
          _
        $region70: #{tpu_custom_call.1} parent=65 // pred_fallthru
          _
        %s268 = sand.u32 %s66, 1
        %s269 = sand.u32 %s66, 1
        %s270 = smul.addr %s269, 32
        %s271 = scalar_lea.vmem [#allocation3], %s270
        // Predicated region
        $region71: #{tpu_custom_call.1} parent=65 // pred_check
          %p272 = pneg %p79
        $region72: #{tpu_custom_call.1} parent=65 // pred_check_branch
          %274 = sbr.rel (%p272) target = $region74
        $region73: #{tpu_custom_call.1} parent=65 // pred_region
          _
        $region74: #{tpu_custom_call.1} parent=65 // pred_fallthru
          _
        %s275 = sand.u32 %s38, 1
        %s276 = sand.u32 %s38, 1
        %s277 = smul.addr %s276, 64
        %s278 = scalar_lea.vmem [#allocation2], %s277
        %p279 = pneg %p51
        %p280 = pneg %p48
        %s281 = sand.u32 %s66, 1
        %s282 = sand.u32 %s66, 1
        %s283 = smul.addr %s282, 32
        %s284 = scalar_lea.vmem [#allocation3], %s283
        %p285 = pneg %p79
        %p286 = pneg %p76
        %p287 = pneg %p105
        %p288 = pneg %p102
        %p289 = scmp.lt.s32.totalorder %s20, 1
        %s290 = scalar_select %p289, %s20, 1
        %s291 = smul.addr %s290, 2
        %s292 = smul.addr %s291, 8
        %s293 = scalar_lea.vmem %s2, %s292
        %p294 = pneg %p131
        %p295 = pneg %p128
        %p296 = scmp.lt.s32.totalorder %s20, 1
        %s297 = scalar_select %p296, %s20, 1
        %s298 = smul.addr %s297, 2
        %s299 = smul.addr %s298, 8
        %s300 = scalar_lea.vmem %s3, %s299
        %p301 = pneg %p157
        %p302 = pneg %p154
        %p303 = scmp.lt.s32.totalorder %s20, 1
        %s304 = scalar_select %p303, %s20, 1
        %s305 = smul.addr %s304, 2
        %s306 = smul.addr %s305, 8
        %s307 = scalar_lea.vmem %s4, %s306
        %s308 = smul.u32 4, %s21
        %s309 = smul.u32 4, %s21
        %p310 = scmp.lt.s32.totalorder %s20, 1
        %s311 = scalar_select %p310, %s20, 1
        %s312 = smul.addr %s311, 2
        %s313 = smul.addr %s312, 8
        %s314 = scalar_lea.vmem %s2, %s313
        %p315 = scmp.lt.s32.totalorder %s20, 1
        %s316 = scalar_select %p315, %s20, 1
        %s317 = smul.addr %s316, 2
        %s318 = smul.addr %s317, 8
        %s319 = scalar_lea.vmem %s3, %s318
        %p320 = scmp.lt.s32.totalorder %s20, 1
        %s321 = scalar_select %p320, %s20, 1
        %s322 = smul.addr %s321, 2
        %s323 = smul.addr %s322, 8
        %s324 = scalar_lea.vmem %s4, %s323
        %p325 = scmp.eq.s32.totalorder %s21, 0
        // Predicated region
        $region75: #{tpu_custom_call.1} parent=65 // pred_check
          %p326 = pneg %p325
        $region76: #{tpu_custom_call.1} parent=65 // pred_check_branch
          %328 = sbr.rel (%p326) target = $region78
        $region77: #{tpu_custom_call.1} parent=65 // pred_region
          %vm329 = vcmask 7168
          %330 = vst.msk [vmem:[%s314] sm:$0xff] %vm329, 0.0
          %vm331 = vcmask 1024
          %332 = vst.msk [vmem:[%s314 + $0x8] sm:$0x3] %vm331, 0.0
          %333 = vst.msk [vmem:[%s319] sm:$0xff] %vm329, 0.0
          %334 = vst.msk [vmem:[%s319 + $0x8] sm:$0x3] %vm331, 0.0
          %335 = vst.msk [vmem:[%s324] sm:$0xff] %vm329, 0.0
          %336 = vst.msk [vmem:[%s324 + $0x8] sm:$0x3] %vm331, 0.0
        $region78: #{tpu_custom_call.1} parent=65 // pred_fallthru
          _
        %v337 = vld [vmem:[%s264] sm:$0xff]
        %v338 = vld [vmem:[%s264 + $0x8] sm:$0xff]
        %v339 = vld [vmem:[%s264 + $0x10] sm:$0xff]
        %v340 = vld [vmem:[%s264 + $0x18] sm:$0xff]
        %v341 = vld [vmem:[%s264 + $0x20] sm:$0x3]
        %v342 = vld [vmem:[%s264 + $0x28] sm:$0x3]
        %v343 = vld [vmem:[%s264 + $0x30] sm:$0x3]
        %v344 = vld [vmem:[%s264 + $0x38] sm:$0x3]
        %v345 = vld [vmem:[%s271] sm:$0xff]
        %v346 = vld [vmem:[%s271 + $0x8] sm:$0xff]
        %v347 = vld [vmem:[%s271 + $0x10] sm:$0x11]
        %v348 = vld [vmem:[%s271 + $0x18] sm:$0x11]
        %v349 = vunpack.c.l.bf16 %v345
        %v350 = vunpack.c.h.bf16 %v345
        %v351 = vunpack.c.l.bf16 %v346
        %v352 = vunpack.c.h.bf16 %v346
        %v353 = vunpack.c.l.bf16 %v347
        %v354 = vunpack.c.h.bf16 %v347
        %v355 = vunpack.c.l.bf16 %v348
        %v356 = vunpack.c.h.bf16 %v348
        %v357 = vmul.f32 %v337, 2.0
        %v358 = vmul.f32 %v338, 2.0
        %v359 = vmul.f32 %v339, 2.0
        %v360 = vmul.f32 %v340, 2.0
        %v361 = vmul.f32 %v341, 2.0
        %v362 = vmul.f32 %v342, 2.0
        %v363 = vmul.f32 %v343, 2.0
        %v364 = vmul.f32 %v344, 2.0
        %v365 = vmul.f32 %v357, %v349
        %v366 = vmul.f32 %v358, %v350
        %v367 = vmul.f32 %v359, %v351
        %v368 = vmul.f32 %v360, %v352
        %v369 = vmul.f32 %v361, %v353
        %v370 = vmul.f32 %v362, %v354
        %v371 = vmul.f32 %v363, %v355
        %v372 = vmul.f32 %v364, %v356
        %v373 = vadd.f32 %v337, %v349
        %v374 = vadd.f32 %v338, %v350
        %v375 = vadd.f32 %v339, %v351
        %v376 = vadd.f32 %v340, %v352
        %v377 = vadd.f32 %v341, %v353
        %v378 = vadd.f32 %v342, %v354
        %v379 = vadd.f32 %v343, %v355
        %v380 = vadd.f32 %v344, %v356
        %v381 = vadd.f32 %v373, 0.0001
        %v382 = vadd.f32 %v374, 0.0001
        %v383 = vadd.f32 %v375, 0.0001
        %v384 = vadd.f32 %v376, 0.0001
        %v385 = vadd.f32 %v377, 0.0001
        %v386 = vadd.f32 %v378, 0.0001
        %v387 = vadd.f32 %v379, 0.0001
        %v388 = vadd.f32 %v380, 0.0001
        %v389 = vrcp.pop %v381
        %v390 = vmul.f32 %v365, %v389
        %v391 = vrcp.pop %v382
        %v392 = vmul.f32 %v366, %v391
        %v393 = vrcp.pop %v383
        %v394 = vmul.f32 %v367, %v393
        %v395 = vrcp.pop %v384
        %v396 = vmul.f32 %v368, %v395
        %v397 = vrcp.pop %v385
        %v398 = vmul.f32 %v369, %v397
        %v399 = vrcp.pop %v386
        %v400 = vmul.f32 %v370, %v399
        %v401 = vrcp.pop %v387
        %v402 = vmul.f32 %v371, %v401
        %v403 = vrcp.pop %v388
        %v404 = vmul.f32 %v372, %v403
        %v405 = vld [vmem:[%s314] sm:$0xff]
        %v406 = vld [vmem:[%s314 + $0x8] sm:$0x3]
        %v407 = vadd.f32 %v390, %v392
        %v408 = vadd.f32 %v407, %v394
        %v409 = vadd.f32 %v408, %v396
        %410 = vadd.xlane.f32.xlu0 %v409
        %v411 = vpop.xlane.xlu0 %410
        %vm412 = vcmask 1041408
        %v413 = vsel %vm412, %v398, 0.0
        %v414 = vsel %vm412, %v400, 0.0
        %v415 = vadd.f32 %v413, %v414
        %v416 = vsel %vm412, %v402, 0.0
        %v417 = vadd.f32 %v415, %v416
        %v418 = vsel %vm412, %v404, 0.0
        %v419 = vadd.f32 %v417, %v418
        %420 = vadd.xlane.f32.xlu0 %v419
        %v421 = vpop.xlane.xlu0 %420
        %v422 = vadd.f32 %v405, %v411
        %v423 = vadd.f32 %v406, %v421
        %vm424 = vcmask 7168
        %425 = vst.msk [vmem:[%s314] sm:$0xff] %vm424, %v422
        %vm426 = vcmask 1024
        %427 = vst.msk [vmem:[%s314 + $0x8] sm:$0x3] %vm426, %v423
        %v428 = vld [vmem:[%s319] sm:$0xff]
        %v429 = vld [vmem:[%s319 + $0x8] sm:$0x3]
        %vm430 = vcmp.eq.f32.partialorder %v349, 1.0
        %vm431 = vcmp.eq.f32.partialorder %v350, 1.0
        %vm432 = vcmp.eq.f32.partialorder %v351, 1.0
        %vm433 = vcmp.eq.f32.partialorder %v352, 1.0
        %vm434 = vcmp.eq.f32.partialorder %v353, 1.0
        %vm435 = vcmp.eq.f32.partialorder %v354, 1.0
        %vm436 = vcmp.eq.f32.partialorder %v355, 1.0
        %vm437 = vcmp.eq.f32.partialorder %v356, 1.0
        %v438 = vsel %vm430, 1, 0
        %v439 = vsel %vm431, 1, 0
        %v440 = vsel %vm432, 1, 0
        %v441 = vsel %vm433, 1, 0
        %v442 = vsel %vm434, 1, 0
        %v443 = vsel %vm435, 1, 0
        %v444 = vsel %vm436, 1, 0
        %v445 = vsel %vm437, 1, 0
        %v446 = vcvt.s32.f32 %v438
        %v447 = vcvt.s32.f32 %v439
        %v448 = vcvt.s32.f32 %v440
        %v449 = vcvt.s32.f32 %v441
        %v450 = vcvt.s32.f32 %v442
        %v451 = vcvt.s32.f32 %v443
        %v452 = vcvt.s32.f32 %v444
        %v453 = vcvt.s32.f32 %v445
        %v454 = vadd.f32 %v446, %v447
        %v455 = vadd.f32 %v454, %v448
        %v456 = vadd.f32 %v455, %v449
        %457 = vadd.xlane.f32.xlu0 %v456
        %v458 = vpop.xlane.xlu0 %457
        %v459 = vsel %vm412, %v450, 0.0
        %v460 = vsel %vm412, %v451, 0.0
        %v461 = vadd.f32 %v459, %v460
        %v462 = vsel %vm412, %v452, 0.0
        %v463 = vadd.f32 %v461, %v462
        %v464 = vsel %vm412, %v453, 0.0
        %v465 = vadd.f32 %v463, %v464
        %466 = vadd.xlane.f32.xlu0 %v465
        %v467 = vpop.xlane.xlu0 %466
        %v468 = vadd.f32 %v428, %v458
        %v469 = vadd.f32 %v429, %v467
        %470 = vst.msk [vmem:[%s319] sm:$0xff] %vm424, %v468
        %471 = vst.msk [vmem:[%s319 + $0x8] sm:$0x3] %vm426, %v469
        %v472 = vsub.f32 1.0, %v337
        %v473 = vsub.f32 1.0, %v338
        %v474 = vsub.f32 1.0, %v339
        %v475 = vsub.f32 1.0, %v340
        %v476 = vsub.f32 1.0, %v341
        %v477 = vsub.f32 1.0, %v342
        %v478 = vsub.f32 1.0, %v343
        %v479 = vsub.f32 1.0, %v344
        %v480 = vmul.f32 %v472, %v472
        %v481 = vmul.f32 %v473, %v473
        %v482 = vmul.f32 %v474, %v474
        %v483 = vmul.f32 %v475, %v475
        %v484 = vmul.f32 %v476, %v476
        %v485 = vmul.f32 %v477, %v477
        %v486 = vmul.f32 %v478, %v478
        %v487 = vmul.f32 %v479, %v479
        %v488 = vld [vmem:[%s324] sm:$0xff]
        %v489 = vld [vmem:[%s324 + $0x8] sm:$0x3]
        %v490 = vsub.f32 0.0, %v480
        %v491 = vsub.f32 0.0, %v481
        %v492 = vsub.f32 0.0, %v482
        %v493 = vsub.f32 0.0, %v483
        %v494 = vsub.f32 0.0, %v484
        %v495 = vsub.f32 0.0, %v485
        %v496 = vsub.f32 0.0, %v486
        %v497 = vsub.f32 0.0, %v487
        %v498 = vmul.f32 %v490, %v349
        %v499 = vmul.f32 %v491, %v350
        %v500 = vmul.f32 %v492, %v351
        %v501 = vmul.f32 %v493, %v352
        %v502 = vmul.f32 %v494, %v353
        %v503 = vmul.f32 %v495, %v354
        %v504 = vmul.f32 %v496, %v355
        %v505 = vmul.f32 %v497, %v356
        %v506 = vadd.f32 %v337, 0.0001
        %v507 = vadd.f32 %v338, 0.0001
        %v508 = vadd.f32 %v339, 0.0001
        %v509 = vadd.f32 %v340, 0.0001
        %v510 = vadd.f32 %v341, 0.0001
        %v511 = vadd.f32 %v342, 0.0001
        %v512 = vadd.f32 %v343, 0.0001
        %v513 = vadd.f32 %v344, 0.0001
        %v514 = vlog2.pop %v506
        %v515 = vmul.f32 %v514, 0.6931472
        %v516 = vlog2.pop %v507
        %v517 = vmul.f32 %v516, 0.6931472
        %v518 = vlog2.pop %v508
        %v519 = vmul.f32 %v518, 0.6931472
        %v520 = vlog2.pop %v509
        %v521 = vmul.f32 %v520, 0.6931472
        %v522 = vlog2.pop %v510
        %v523 = vmul.f32 %v522, 0.6931472
        %v524 = vlog2.pop %v511
        %v525 = vmul.f32 %v524, 0.6931472
        %v526 = vlog2.pop %v512
        %v527 = vmul.f32 %v526, 0.6931472
        %v528 = vlog2.pop %v513
        %v529 = vmul.f32 %v528, 0.6931472
        %v530 = vmul.f32 %v498, %v515
        %v531 = vmul.f32 %v499, %v517
        %v532 = vmul.f32 %v500, %v519
        %v533 = vmul.f32 %v501, %v521
        %v534 = vmul.f32 %v502, %v523
        %v535 = vmul.f32 %v503, %v525
        %v536 = vmul.f32 %v504, %v527
        %v537 = vmul.f32 %v505, %v529
        %v538 = vadd.f32 %v530, %v531
        %v539 = vadd.f32 %v538, %v532
        %v540 = vadd.f32 %v539, %v533
        %541 = vadd.xlane.f32.xlu0 %v540
        %v542 = vpop.xlane.xlu0 %541
        %v543 = vsel %vm412, %v534, 0.0
        %v544 = vsel %vm412, %v535, 0.0
        %v545 = vadd.f32 %v543, %v544
        %v546 = vsel %vm412, %v536, 0.0
        %v547 = vadd.f32 %v545, %v546
        %v548 = vsel %vm412, %v537, 0.0
        %v549 = vadd.f32 %v547, %v548
        %550 = vadd.xlane.f32.xlu0 %v549
        %v551 = vpop.xlane.xlu0 %550
        %v552 = vadd.f32 %v488, %v542
        %v553 = vadd.f32 %v489, %v551
        %554 = vst.msk [vmem:[%s324] sm:$0xff] %vm424, %v552
        %555 = vst.msk [vmem:[%s324 + $0x8] sm:$0x3] %vm426, %v553
        %p556 = scmp.lt.s32.totalorder %s20, 1
        %s557 = scalar_select %p556, %s20, 1
        %s558 = smul.addr %s557, 2
        %s559 = smul.addr %s558, 8
        %s560 = scalar_lea.vmem %s2, %s559
        %p561 = scmp.lt.s32.totalorder %s20, 1
        %s562 = scalar_select %p561, %s20, 1
        %s563 = smul.addr %s562, 2
        %s564 = smul.addr %s563, 8
        %s565 = scalar_lea.vmem %s3, %s564
        %p566 = scmp.lt.s32.totalorder %s20, 1
        %s567 = scalar_select %p566, %s20, 1
        %s568 = smul.addr %s567, 2
        %s569 = smul.addr %s568, 8
        %s570 = scalar_lea.vmem %s4, %s569
        // Predicated region
        $region79: #{tpu_custom_call.1} parent=65 // pred_check
          %p571 = pneg %p102
        $region80: #{tpu_custom_call.1} parent=65 // pred_check_branch
          %573 = sbr.rel (%p571) target = $region82
        $region81: #{tpu_custom_call.1} parent=65 // pred_region
          _
        $region82: #{tpu_custom_call.1} parent=65 // pred_fallthru
          _
        // Predicated region
        $region83: #{tpu_custom_call.1} parent=65 // pred_check
          %p574 = pneg %p128
        $region84: #{tpu_custom_call.1} parent=65 // pred_check_branch
          %576 = sbr.rel (%p574) target = $region86
        $region85: #{tpu_custom_call.1} parent=65 // pred_region
          _
        $region86: #{tpu_custom_call.1} parent=65 // pred_fallthru
          _
        // Predicated region
        $region87: #{tpu_custom_call.1} parent=65 // pred_check
          %p577 = pneg %p154
        $region88: #{tpu_custom_call.1} parent=65 // pred_check_branch
          %579 = sbr.rel (%p577) target = $region90
        $region89: #{tpu_custom_call.1} parent=65 // pred_region
          _
        $region90: #{tpu_custom_call.1} parent=65 // pred_fallthru
          _
      $region66: #{tpu_custom_call.1} parent=5 // pred_fallthru
        _
      %p580 = scmp.le.s32.totalorder 2, %s11
      // Predicated region
      $region91: #{tpu_custom_call.1} parent=5 // pred_check
        %p581 = pneg %p580
      $region92: #{tpu_custom_call.1} parent=5 // pred_check_branch
        %583 = sbr.rel (%p581) target = $region94
      $region93: #{tpu_custom_call.1} parent=5 // pred_region
        %s584 = ssub.s32 %s11, 2
        // Predicated region
        $region95: #{tpu_custom_call.1} parent=93 // pred_check
          %p585 = pneg %p108
        $region96: #{tpu_custom_call.1} parent=93 // pred_check_branch
          %587 = sbr.rel (%p585) target = $region98
        $region97: #{tpu_custom_call.1} parent=93 // pred_region
          %p588 = scmp.lt.s32.totalorder %s22, 1
          %s589 = scalar_select %p588, %s22, 1
          %s590 = smul.addr %s589, 2
          %s591 = smul.addr %s590, 8
          %s592 = scalar_lea.vmem %s2, %s591
        $region98: #{tpu_custom_call.1} parent=93 // pred_fallthru
          _
        // Predicated region
        $region99: #{tpu_custom_call.1} parent=93 // pred_check
          %p593 = pneg %p134
        $region100: #{tpu_custom_call.1} parent=93 // pred_check_branch
          %595 = sbr.rel (%p593) target = $region102
        $region101: #{tpu_custom_call.1} parent=93 // pred_region
          %p596 = scmp.lt.s32.totalorder %s22, 1
          %s597 = scalar_select %p596, %s22, 1
          %s598 = smul.addr %s597, 2
          %s599 = smul.addr %s598, 8
          %s600 = scalar_lea.vmem %s3, %s599
        $region102: #{tpu_custom_call.1} parent=93 // pred_fallthru
          _
        // Predicated region
        $region103: #{tpu_custom_call.1} parent=93 // pred_check
          %p601 = pneg %p160
        $region104: #{tpu_custom_call.1} parent=93 // pred_check_branch
          %603 = sbr.rel (%p601) target = $region106
        $region105: #{tpu_custom_call.1} parent=93 // pred_region
          %p604 = scmp.lt.s32.totalorder %s22, 1
          %s605 = scalar_select %p604, %s22, 1
          %s606 = smul.addr %s605, 2
          %s607 = smul.addr %s606, 8
          %s608 = scalar_lea.vmem %s4, %s607
        $region106: #{tpu_custom_call.1} parent=93 // pred_fallthru
          _
      $region94: #{tpu_custom_call.1} parent=5 // pred_fallthru
        _
    $region6: #{tpu_custom_call.1} parent=1 // loop_footer
      %s15 = sadd.s32 1, %s11
    $region7: #{tpu_custom_call.1} parent=1 // loop_footer_branch
      %10 = sbr.rel target = $region3
    $region8: #{tpu_custom_call.1} parent=1 // loop_exit
      _

</llo_original>
